<compile_context>
chip_gen: v7x
topology: tpu7x:2x2x1
jax: 0.10.0
libtpu: 0.0.40
codegen_flags: <defaults>
</compile_context>

<pallas_src>
import jax
import jax.numpy as jnp
from jax.experimental import pallas as pl
from jax.experimental.pallas import tpu as pltpu


def _round_up(n, m):
    return ((n + m - 1) // m) * m


def _cdiv(a, b):
    return (a + b - 1) // b


def _generator_kernel(x_ref, w1_ref, b1_ref, w2_ref, b2_ref, o_ref):
    # ---- Linear(z_dim, 256): bf16 operands, f32 accumulation on the MXU ----
    h = jnp.dot(x_ref[...], w1_ref[...], preferred_element_type=jnp.float32)
    h = h + b1_ref[...]                       # f32 bias broadcast [1, hidden]
    # ---- LeakyReLU(0.1): single vmax ----
    h = jnp.maximum(h, 0.1 * h)
    # ---- Linear(256, img_dim): cast activations to bf16 for the MXU ----
    y = jnp.dot(h.astype(w2_ref.dtype), w2_ref[...],
                preferred_element_type=jnp.float32)
    y = y + b2_ref[...]                       # f32 bias broadcast [1, img_dim]
    # ---- Tanh in f32, single cast at the store ----
    o_ref[...] = jnp.tanh(y).astype(o_ref.dtype)


def prepare_generator_params(w1, b1, w2, b2):
    """One-time packing of Generator parameters for the Pallas kernel.

    Do this at init / after each optimizer step, NOT per forward call:
      w1: [z_dim, 256]  -> bf16
      b1: [256]         -> f32 row vector [1, 256]
      w2: [256, img_dim]-> bf16
      b2: [img_dim]     -> f32 row vector [1, img_dim]
    """
    return (w1.astype(jnp.bfloat16),
            b1.reshape(1, -1).astype(jnp.float32),
            w2.astype(jnp.bfloat16),
            b2.reshape(1, -1).astype(jnp.float32))


def generator_forward(x, params, *, block_b=512):
    """x: [B, z_dim]; params: output of prepare_generator_params."""
    w1, b1, w2, b2 = params
    B, z_dim = x.shape
    hidden = w1.shape[1]
    img_dim = w2.shape[1]
    assert w1.shape == (z_dim, hidden)
    assert b1.shape == (1, hidden)
    assert w2.shape == (hidden, img_dim)
    assert b2.shape == (1, img_dim)
    assert hidden % 128 == 0, "hidden dim assumed lane-aligned (256)"

    # Batch tiling: pad only to a multiple of 8 sublanes, pick the tile count
    # with cdiv (bounded padding waste), and force >=2 grid steps whenever the
    # batch allows so the "parallel" axis can shard across v7x's two TCs.
    b8 = _round_up(B, 8)
    num_tiles = max(_cdiv(b8, block_b), 1)
    if b8 >= 16:
        num_tiles = max(num_tiles, 2)
    tb = _round_up(_cdiv(b8, num_tiles), 8)
    b_pad = tb * num_tiles

    # Only per-call work on x: bf16 cast (+ row padding if needed). Weights
    # arrive pre-packed; no feature-dim padding anywhere.
    x_b = x.astype(jnp.bfloat16)
    if b_pad != B:
        x_b = jnp.zeros((b_pad, z_dim), jnp.bfloat16).at[:B, :].set(x_b)

    cost = pl.CostEstimate(
        flops=2 * b_pad * (z_dim * hidden + hidden * img_dim),
        transcendentals=b_pad * img_dim,                     # tanh
        bytes_accessed=(x_b.size * 2 + w1.size * 2 + w2.size * 2
                        + b1.size * 4 + b2.size * 4 + b_pad * img_dim * 4),
    )

    out_p = pl.pallas_call(
        _generator_kernel,
        out_shape=jax.ShapeDtypeStruct((b_pad, img_dim), jnp.float32),
        grid=(num_tiles,),
        in_specs=[
            pl.BlockSpec((tb, z_dim), lambda i: (i, 0)),       # x tile (pipelined)
            pl.BlockSpec((z_dim, hidden), lambda i: (0, 0)),   # w1 resident
            pl.BlockSpec((1, hidden), lambda i: (0, 0)),       # b1 resident
            pl.BlockSpec((hidden, img_dim), lambda i: (0, 0)), # w2 resident
            pl.BlockSpec((1, img_dim), lambda i: (0, 0)),      # b2 resident
        ],
        out_specs=pl.BlockSpec((tb, img_dim), lambda i: (i, 0)),  # true img_dim
        compiler_params=pltpu.CompilerParams(
            dimension_semantics=("parallel",)),
        cost_estimate=cost,
    )(x_b, w1, b1, w2, b2)

    if b_pad != B:
        out_p = out_p[:B, :]
    return out_p.astype(x.dtype)


def _reference_forward(x, w1, b1, w2, b2):
    # f32 reference mirroring the kernel's bf16 matmul inputs / f32 accumulation.
    xb = x.astype(jnp.bfloat16).astype(jnp.float32)
    w1b = w1.astype(jnp.bfloat16).astype(jnp.float32)
    w2b = w2.astype(jnp.bfloat16).astype(jnp.float32)
    h = xb @ w1b + b1
    h = jnp.where(h > 0, h, 0.1 * h)
    hb = h.astype(jnp.bfloat16).astype(jnp.float32)
    y = hb @ w2b + b2
    return jnp.tanh(y)


if __name__ == "__main__":
    # Deterministic synthetic parameters (PyTorch-style uniform +/- 1/sqrt(fan_in)).
    z_dim, hidden, img_dim, batch = 64, 256, 784, 8

    key = jax.random.PRNGKey(0)
    k_x, k_w1, k_b1, k_w2, k_b2 = jax.random.split(key, 5)

    bound1 = 1.0 / jnp.sqrt(z_dim)
    bound2 = 1.0 / jnp.sqrt(hidden)
    # Stored pre-transposed as [in, out] relative to PyTorch's [out, in].
    w1 = jax.random.uniform(k_w1, (z_dim, hidden), jnp.float32, -bound1, bound1)
    b1 = jax.random.uniform(k_b1, (hidden,), jnp.float32, -bound1, bound1)
    w2 = jax.random.uniform(k_w2, (hidden, img_dim), jnp.float32, -bound2, bound2)
    b2 = jax.random.uniform(k_b2, (img_dim,), jnp.float32, -bound2, bound2)

    x = jax.random.normal(k_x, (batch, z_dim), jnp.float32)

    # One-time parameter packing (hoisted out of the forward path).
    params = jax.tree.map(jax.block_until_ready,
                          prepare_generator_params(w1, b1, w2, b2))

    fwd = jax.jit(generator_forward)
    out = jax.block_until_ready(fwd(x, params))

    ref = _reference_forward(x, w1, b1, w2, b2)
    assert out.shape == (batch, img_dim), out.shape
    assert jnp.allclose(out, ref, atol=5e-3, rtol=5e-3), "mismatch vs reference"

    print("KERNEL_OK")
</pallas_src>

<mosaic_0001>
module attributes {stable_mosaic.version = 11 : i64} {
  func.func @_generator_kernel(%arg0: i32, %arg1: memref<8x64xbf16, #tpu.memory_space<vmem>>, %arg2: memref<64x256xbf16, #tpu.memory_space<vmem>>, %arg3: memref<1x256xf32, #tpu.memory_space<vmem>>, %arg4: memref<256x784xbf16, #tpu.memory_space<vmem>>, %arg5: memref<1x784xf32, #tpu.memory_space<vmem>>, %arg6: memref<8x784xf32, #tpu.memory_space<vmem>>) attributes {dimension_semantics = [#tpu.dimension_semantics<parallel>], iteration_bounds = array<i64: 1>, scalar_prefetch = 0 : i64, scratch_operands = 0 : i64, tpu.core_type = #tpu.core_type<tc>, window_params = [{transform_indices = @transform_0, window_bounds = array<i64: 8, 64>}, {pipeline_mode = #tpu.pipeline_mode<synchronous>, transform_indices = @transform_1, window_bounds = array<i64: 64, 256>}, {pipeline_mode = #tpu.pipeline_mode<synchronous>, transform_indices = @transform_2, window_bounds = array<i64: 1, 256>}, {pipeline_mode = #tpu.pipeline_mode<synchronous>, transform_indices = @transform_3, window_bounds = array<i64: 256, 784>}, {pipeline_mode = #tpu.pipeline_mode<synchronous>, transform_indices = @transform_4, window_bounds = array<i64: 1, 784>}, {transform_indices = @transform_5, window_bounds = array<i64: 8, 784>}]} {
    %c0 = arith.constant 0 : index
    %c0_0 = arith.constant 0 : index
    %0 = vector.load %arg1[%c0, %c0_0] : memref<8x64xbf16, #tpu.memory_space<vmem>>, vector<8x64xbf16>
    %c0_1 = arith.constant 0 : index
    %c0_2 = arith.constant 0 : index
    %1 = vector.load %arg2[%c0_1, %c0_2] : memref<64x256xbf16, #tpu.memory_space<vmem>>, vector<64x256xbf16>
    %cst = arith.constant dense<0.000000e+00> : vector<8x256xf32>
    %2 = tpu.matmul %0, %1, %cst {dimension_numbers = #tpu.dot_dimension_numbers<[1], [0], [0], [1], [0, 0, 1, 1], [], []>} : vector<8x64xbf16>, vector<64x256xbf16>, vector<8x256xf32> -> vector<8x256xf32>
    %c0_3 = arith.constant 0 : index
    %c0_4 = arith.constant 0 : index
    %3 = vector.load %arg3[%c0_3, %c0_4] : memref<1x256xf32, #tpu.memory_space<vmem>>, vector<1x256xf32>
    %4 = vector.broadcast %3 : vector<1x256xf32> to vector<8x256xf32>
    %5 = arith.addf %2, %4 : vector<8x256xf32>
    %cst_5 = arith.constant 1.000000e-01 : f32
    %6 = vector.broadcast %cst_5 : f32 to vector<8x256xf32>
    %7 = arith.mulf %6, %5 : vector<8x256xf32>
    %8 = arith.maximumf %5, %7 : vector<8x256xf32>
    %9 = arith.truncf %8 : vector<8x256xf32> to vector<8x256xbf16>
    %c0_6 = arith.constant 0 : index
    %c0_7 = arith.constant 0 : index
    %10 = vector.load %arg4[%c0_6, %c0_7] : memref<256x784xbf16, #tpu.memory_space<vmem>>, vector<256x784xbf16>
    %cst_8 = arith.constant dense<0.000000e+00> : vector<8x784xf32>
    %11 = tpu.matmul %9, %10, %cst_8 {dimension_numbers = #tpu.dot_dimension_numbers<[1], [0], [0], [1], [0, 0, 1, 1], [], []>} : vector<8x256xbf16>, vector<256x784xbf16>, vector<8x784xf32> -> vector<8x784xf32>
    %c0_9 = arith.constant 0 : index
    %c0_10 = arith.constant 0 : index
    %12 = vector.load %arg5[%c0_9, %c0_10] : memref<1x784xf32, #tpu.memory_space<vmem>>, vector<1x784xf32>
    %13 = vector.broadcast %12 : vector<1x784xf32> to vector<8x784xf32>
    %14 = arith.addf %11, %13 : vector<8x784xf32>
    %15 = math.tanh %14 : vector<8x784xf32>
    %c0_11 = arith.constant 0 : index
    %c0_12 = arith.constant 0 : index
    %16 = vector.load %arg6[%c0_11, %c0_12] : memref<8x784xf32, #tpu.memory_space<vmem>>, vector<8x784xf32>
    tpu.vector_store %arg6[%c0_11, %c0_12], %15 {strides = array<i32>} : memref<8x784xf32, #tpu.memory_space<vmem>>, vector<8x784xf32>,
    return
  }
  func.func @transform_0(%arg0: i32) -> (i32, i32) {
    %c0_i32 = arith.constant 0 : i32
    %c0_i32_0 = arith.constant 0 : i32
    return %arg0, %c0_i32 : i32, i32
  }
  func.func @transform_1(%arg0: i32) -> (i32, i32) {
    %c0_i32 = arith.constant 0 : i32
    %c0_i32_0 = arith.constant 0 : i32
    %c0_i32_1 = arith.constant 0 : i32
    return %c0_i32, %c0_i32_0 : i32, i32
  }
  func.func @transform_2(%arg0: i32) -> (i32, i32) {
    %c0_i32 = arith.constant 0 : i32
    %c0_i32_0 = arith.constant 0 : i32
    %c0_i32_1 = arith.constant 0 : i32
    return %c0_i32, %c0_i32_0 : i32, i32
  }
  func.func @transform_3(%arg0: i32) -> (i32, i32) {
    %c0_i32 = arith.constant 0 : i32
    %c0_i32_0 = arith.constant 0 : i32
    %c0_i32_1 = arith.constant 0 : i32
    return %c0_i32, %c0_i32_0 : i32, i32
  }
  func.func @transform_4(%arg0: i32) -> (i32, i32) {
    %c0_i32 = arith.constant 0 : i32
    %c0_i32_0 = arith.constant 0 : i32
    %c0_i32_1 = arith.constant 0 : i32
    return %c0_i32, %c0_i32_0 : i32, i32
  }
  func.func @transform_5(%arg0: i32) -> (i32, i32) {
    %c0_i32 = arith.constant 0 : i32
    %c0_i32_0 = arith.constant 0 : i32
    return %arg0, %c0_i32 : i32, i32
  }
}

</mosaic_0001>

<llo_original>
// kernel: generator_forward.1
$region0: #{generator_forward.1}
  #allocation0 [shape = 'u32[]', space=smem, size = 0x4, offset = 0x4, fixed_abs, tag = 'smem constant byte address 0x4 - core index']
  #allocation1 [shape = 'u32[144,128]{1,0:T(1,128)}', space=vmem, size = 0x12000, scoped, tag = 'internal scratch']
  %s0 = inlined_call_operand.vmem [shape: bf16[8,64], index: 0, kind: input, shape index: {}]
  %s1 = inlined_call_operand.vmem [shape: bf16[64,256], index: 1, kind: input, shape index: {}]
  %s2 = inlined_call_operand.vmem [shape: f32[1,256], index: 2, kind: input, shape index: {}]
  %s3 = inlined_call_operand.vmem [shape: bf16[256,784], index: 3, kind: input, shape index: {}]
  %s4 = inlined_call_operand.vmem [shape: f32[1,784], index: 4, kind: input, shape index: {}]
  %s5 = inlined_call_operand.hbm [shape: f32[8,784], index: 5, kind: output, shape index: {}]
  %s6 = sld [smem:[#allocation0]]
  $region30: #{generator_forward.1} parent=0
    _
  %s8 = ssub.s32 1, %s6
  %s9 = scalar_select 0, %s8, %s6
  $region1: #{generator_forward.1} parent=0
    #allocation2 [shape = 'u8[28672]{0}', space=vmem, size = 0x7000, scoped, tag = 'output window, operand 0, single buffered']
    #allocation3 [shape = 's32[1]{0}', space=sflag, size = 0x4, scoped, tag = 'scoped memory for generator_forward.1']
    %10 = vsyncpa [#allocation3], 0
    // Predicated region
    $region2: #{generator_forward.1} parent=1 // pred_check
      _
    $region3: #{generator_forward.1} parent=1 // pred_check_branch
      %12 = sbr.rel (0) target = $region5
    $region4: #{generator_forward.1} parent=1 // pred_region
      _
    $region5: #{generator_forward.1} parent=1 // pred_fallthru
      _
    // Predicated region
    $region6: #{generator_forward.1} parent=1 // pred_check
      _
    $region7: #{generator_forward.1} parent=1 // pred_check_branch
      %14 = sbr.rel (0) target = $region9
    $region8: #{generator_forward.1} parent=1 // pred_region
      _
    $region9: #{generator_forward.1} parent=1 // pred_fallthru
      _
    // Predicated region
    $region10: #{generator_forward.1} parent=1 // pred_check
      _
    $region11: #{generator_forward.1} parent=1 // pred_check_branch
      %16 = sbr.rel (0) target = $region13
    $region12: #{generator_forward.1} parent=1 // pred_region
      _
    $region13: #{generator_forward.1} parent=1 // pred_fallthru
      _
    // Predicated region
    $region14: #{generator_forward.1} parent=1 // pred_check
      _
    $region15: #{generator_forward.1} parent=1 // pred_check_branch
      %18 = sbr.rel (0) target = $region17
    $region16: #{generator_forward.1} parent=1 // pred_region
      _
    $region17: #{generator_forward.1} parent=1 // pred_fallthru
      _
    // Predicated region
    $region18: #{generator_forward.1} parent=1 // pred_check
      _
    $region19: #{generator_forward.1} parent=1 // pred_check_branch
      %20 = sbr.rel (0) target = $region21
    $region20: #{generator_forward.1} parent=1 // pred_region
      _
    $region21: #{generator_forward.1} parent=1 // pred_fallthru
      _
    %v22 = vld [vmem:[%s0] sm:$0xf]
    %v23 = vld [vmem:[%s1] sm:$0xff]
    %v24 = vld [vmem:[%s1 + $0x8] sm:$0xff]
    %v25 = vld [vmem:[%s1 + $0x10] sm:$0xff]
    %v26 = vld [vmem:[%s1 + $0x18] sm:$0xff]
    %v27 = vld [vmem:[%s1 + $0x20] sm:$0xff]
    %v28 = vld [vmem:[%s1 + $0x28] sm:$0xff]
    %v29 = vld [vmem:[%s1 + $0x30] sm:$0xff]
    %v30 = vld [vmem:[%s1 + $0x38] sm:$0xff]
    %v31 = vld [vmem:[%s2] sm:$0x3]
    %v33 = vlaneseq
    %v34 = vshrl.u32 %v33, 7
    %v35 = vsub.s32 0, %v34
    %v36 = vrot.slane %v31, %v35
    %v37 = vlaneseq
    %v38 = vshrl.u32 %v37, 7
    %v39 = vsub.s32 1, %v38
    %v40 = vrot.slane %v31, %v39
    %v51 = vunpack.c.l.b16 %v23
    %v52 = vunpack.c.h.b16 %v23
    %v53 = vunpack.c.l.b16 %v24
    %v54 = vunpack.c.h.b16 %v24
    %v55 = vunpack.c.l.b16 %v25
    %v56 = vunpack.c.h.b16 %v25
    %v57 = vunpack.c.l.b16 %v26
    %v58 = vunpack.c.h.b16 %v26
    %v59 = vunpack.c.l.b16 %v27
    %v60 = vunpack.c.h.b16 %v27
    %v61 = vunpack.c.l.b16 %v28
    %v62 = vunpack.c.h.b16 %v28
    %v63 = vunpack.c.l.b16 %v29
    %v64 = vunpack.c.h.b16 %v29
    %v65 = vunpack.c.l.b16 %v30
    %v66 = vunpack.c.h.b16 %v30
    %v67 = vpack.c.b16 %v53, %v51
    %v68 = vpack.c.b16 %v54, %v52
    %v69 = vpack.c.b16 %v57, %v55
    %v70 = vpack.c.b16 %v58, %v56
    %v71 = vpack.c.b16 %v61, %v59
    %v72 = vpack.c.b16 %v62, %v60
    %v73 = vpack.c.b16 %v65, %v63
    %v74 = vpack.c.b16 %v66, %v64
    %vm83 = vcmask 523264
    %v85 = vsel %vm83, %v22, 0
    %87 = vmatprep.subr.bf16.mxu0 %v68
    %88 = vmatpush1.bf16.msra.mxu0 %v67
    %89 = vmatprep.subr.bf16.mxu0 %v70
    %90 = vmatpush1.bf16.msra.mxu0 %v69
    %91 = vmatprep.subr.bf16.mxu0 %v72
    %92 = vmatpush1.bf16.msra.mxu0 %v71
    %93 = vmatprep.subr.bf16.mxu0 %v74
    %94 = vmatpush1.bf16.msra.mxu0 %v73
    %95 = vmatprep.subr.bf16.mxu0 0
    %96 = vmatpush1.bf16.msra.mxu0 0
    %97 = vmatprep.subr.bf16.mxu0 0
    %98 = vmatpush1.bf16.msra.mxu0 0
    %99 = vmatprep.subr.bf16.mxu0 0
    %100 = vmatpush1.bf16.msra.mxu0 0
    %101 = vmatprep.subr.bf16.mxu0 0
    %102 = vmatpush1.bf16.msra.mxu0 0
    %103 = vmatprep.subr.bf16.mxu0 0
    %104 = vmatpush1.bf16.msra.mxu0 0
    %105 = vmatprep.subr.bf16.mxu0 0
    %106 = vmatpush1.bf16.msra.mxu0 0
    %107 = vmatprep.subr.bf16.mxu0 0
    %108 = vmatpush1.bf16.msra.mxu0 0
    %109 = vmatprep.subr.bf16.mxu0 0
    %110 = vmatpush1.bf16.msra.mxu0 0
    %111 = vmatprep.subr.bf16.mxu0 0
    %112 = vmatpush1.bf16.msra.mxu0 0
    %113 = vmatprep.subr.bf16.mxu0 0
    %114 = vmatpush1.bf16.msra.mxu0 0
    %115 = vmatprep.subr.bf16.mxu0 0
    %116 = vmatpush1.bf16.msra.mxu0 0
    %117 = vmatprep.subr.bf16.mxu0 0
    %118 = vmatpush1.bf16.msra.mxu0 0
    %119 = vmatprep.mubr.bf16.mxu0 0
    %120 = vmatmul.mubr.bf16.gmra.mrb[0].mxu0 %v85
    %v121 = vpop.f32.mrb[0].mxu0
    %v122 = vadd.f32 %v36, %v121
    %v123 = vpop.f32.mrb[0].mxu0
    %v124 = vadd.f32 %v40, %v123
    %v125 = vpop.f32.mrb[0].mxu0
    %v126 = vpop.f32.mrb[0].mxu0
    %127 = vdwg.mxu0
    %v128 = vmul.f32 %v122, 0.1
    %v129 = vmul.f32 %v124, 0.1
    %v130 = vmax.f32 %v122, %v128
    %v131 = vmax.f32 %v124, %v129
    %v132 = vpack.c.bf16 %v130, %v130
    %v133 = vpack.c.bf16 %v131, %v131
    %v134 = vld [vmem:[%s3] sm:$0xff]
    %v135 = vld [vmem:[%s3 + $0x8] sm:$0xff]
    %v136 = vld [vmem:[%s3 + $0x10] sm:$0xff]
    %v137 = vld [vmem:[%s3 + $0x18] sm:$0xf]
    %v138 = vld [vmem:[%s3 + $0x1c] sm:$0xff]
    %v139 = vld [vmem:[%s3 + $0x24] sm:$0xff]
    %v140 = vld [vmem:[%s3 + $0x2c] sm:$0xff]
    %v141 = vld [vmem:[%s3 + $0x34] sm:$0xf]
    %v142 = vld [vmem:[%s3 + $0x38] sm:$0xff]
    %v143 = vld [vmem:[%s3 + $0x40] sm:$0xff]
    %v144 = vld [vmem:[%s3 + $0x48] sm:$0xff]
    %v145 = vld [vmem:[%s3 + $0x50] sm:$0xf]
    %v146 = vld [vmem:[%s3 + $0x54] sm:$0xff]
    %v147 = vld [vmem:[%s3 + $0x5c] sm:$0xff]
    %v148 = vld [vmem:[%s3 + $0x64] sm:$0xff]
    %v149 = vld [vmem:[%s3 + $0x6c] sm:$0xf]
    %v150 = vld [vmem:[%s3 + $0x70] sm:$0xff]
    %v151 = vld [vmem:[%s3 + $0x78] sm:$0xff]
    %v152 = vld [vmem:[%s3 + $0x80] sm:$0xff]
    %v153 = vld [vmem:[%s3 + $0x88] sm:$0xf]
    %v154 = vld [vmem:[%s3 + $0x8c] sm:$0xff]
    %v155 = vld [vmem:[%s3 + $0x94] sm:$0xff]
    %v156 = vld [vmem:[%s3 + $0x9c] sm:$0xff]
    %v157 = vld [vmem:[%s3 + $0xa4] sm:$0xf]
    %v158 = vld [vmem:[%s3 + $0xa8] sm:$0xff]
    %v159 = vld [vmem:[%s3 + $0xb0] sm:$0xff]
    %v160 = vld [vmem:[%s3 + $0xb8] sm:$0xff]
    %v161 = vld [vmem:[%s3 + $0xc0] sm:$0xf]
    %v162 = vld [vmem:[%s3 + $0xc4] sm:$0xff]
    %v163 = vld [vmem:[%s3 + $0xcc] sm:$0xff]
    %v164 = vld [vmem:[%s3 + $0xd4] sm:$0xff]
    %v165 = vld [vmem:[%s3 + $0xdc] sm:$0xf]
    %v166 = vld [vmem:[%s3 + $0xe0] sm:$0xff]
    %v167 = vld [vmem:[%s3 + $0xe8] sm:$0xff]
    %v168 = vld [vmem:[%s3 + $0xf0] sm:$0xff]
    %v169 = vld [vmem:[%s3 + $0xf8] sm:$0xf]
    %v170 = vld [vmem:[%s3 + $0xfc] sm:$0xff]
    %v171 = vld [vmem:[%s3 + $0x104] sm:$0xff]
    %v172 = vld [vmem:[%s3 + $0x10c] sm:$0xff]
    %v173 = vld [vmem:[%s3 + $0x114] sm:$0xf]
    %v174 = vld [vmem:[%s3 + $0x118] sm:$0xff]
    %v175 = vld [vmem:[%s3 + $0x120] sm:$0xff]
    %v176 = vld [vmem:[%s3 + $0x128] sm:$0xff]
    %v177 = vld [vmem:[%s3 + $0x130] sm:$0xf]
    %v178 = vld [vmem:[%s3 + $0x134] sm:$0xff]
    %v179 = vld [vmem:[%s3 + $0x13c] sm:$0xff]
    %v180 = vld [vmem:[%s3 + $0x144] sm:$0xff]
    %v181 = vld [vmem:[%s3 + $0x14c] sm:$0xf]
    %v182 = vld [vmem:[%s3 + $0x150] sm:$0xff]
    %v183 = vld [vmem:[%s3 + $0x158] sm:$0xff]
    %v184 = vld [vmem:[%s3 + $0x160] sm:$0xff]
    %v185 = vld [vmem:[%s3 + $0x168] sm:$0xf]
    %v186 = vld [vmem:[%s3 + $0x16c] sm:$0xff]
    %v187 = vld [vmem:[%s3 + $0x174] sm:$0xff]
    %v188 = vld [vmem:[%s3 + $0x17c] sm:$0xff]
    %v189 = vld [vmem:[%s3 + $0x184] sm:$0xf]
    %v190 = vld [vmem:[%s3 + $0x188] sm:$0xff]
    %v191 = vld [vmem:[%s3 + $0x190] sm:$0xff]
    %v192 = vld [vmem:[%s3 + $0x198] sm:$0xff]
    %v193 = vld [vmem:[%s3 + $0x1a0] sm:$0xf]
    %v194 = vld [vmem:[%s3 + $0x1a4] sm:$0xff]
    %v195 = vld [vmem:[%s3 + $0x1ac] sm:$0xff]
    %v196 = vld [vmem:[%s3 + $0x1b4] sm:$0xff]
    %v197 = vld [vmem:[%s3 + $0x1bc] sm:$0xf]
    %v198 = vld [vmem:[%s3 + $0x1c0] sm:$0xff]
    %v199 = vld [vmem:[%s3 + $0x1c8] sm:$0xff]
    %v200 = vld [vmem:[%s3 + $0x1d0] sm:$0xff]
    %v201 = vld [vmem:[%s3 + $0x1d8] sm:$0xf]
    %v202 = vld [vmem:[%s3 + $0x1dc] sm:$0xff]
    %v203 = vld [vmem:[%s3 + $0x1e4] sm:$0xff]
    %v204 = vld [vmem:[%s3 + $0x1ec] sm:$0xff]
    %v205 = vld [vmem:[%s3 + $0x1f4] sm:$0xf]
    %v206 = vld [vmem:[%s3 + $0x1f8] sm:$0xff]
    %v207 = vld [vmem:[%s3 + $0x200] sm:$0xff]
    %v208 = vld [vmem:[%s3 + $0x208] sm:$0xff]
    %v209 = vld [vmem:[%s3 + $0x210] sm:$0xf]
    %v210 = vld [vmem:[%s3 + $0x214] sm:$0xff]
    %v211 = vld [vmem:[%s3 + $0x21c] sm:$0xff]
    %v212 = vld [vmem:[%s3 + $0x224] sm:$0xff]
    %v213 = vld [vmem:[%s3 + $0x22c] sm:$0xf]
    %v214 = vld [vmem:[%s3 + $0x230] sm:$0xff]
    %v215 = vld [vmem:[%s3 + $0x238] sm:$0xff]
    %v216 = vld [vmem:[%s3 + $0x240] sm:$0xff]
    %v217 = vld [vmem:[%s3 + $0x248] sm:$0xf]
    %v218 = vld [vmem:[%s3 + $0x24c] sm:$0xff]
    %v219 = vld [vmem:[%s3 + $0x254] sm:$0xff]
    %v220 = vld [vmem:[%s3 + $0x25c] sm:$0xff]
    %v221 = vld [vmem:[%s3 + $0x264] sm:$0xf]
    %v222 = vld [vmem:[%s3 + $0x268] sm:$0xff]
    %v223 = vld [vmem:[%s3 + $0x270] sm:$0xff]
    %v224 = vld [vmem:[%s3 + $0x278] sm:$0xff]
    %v225 = vld [vmem:[%s3 + $0x280] sm:$0xf]
    %v226 = vld [vmem:[%s3 + $0x284] sm:$0xff]
    %v227 = vld [vmem:[%s3 + $0x28c] sm:$0xff]
    %v228 = vld [vmem:[%s3 + $0x294] sm:$0xff]
    %v229 = vld [vmem:[%s3 + $0x29c] sm:$0xf]
    %v230 = vld [vmem:[%s3 + $0x2a0] sm:$0xff]
    %v231 = vld [vmem:[%s3 + $0x2a8] sm:$0xff]
    %v232 = vld [vmem:[%s3 + $0x2b0] sm:$0xff]
    %v233 = vld [vmem:[%s3 + $0x2b8] sm:$0xf]
    %v234 = vld [vmem:[%s3 + $0x2bc] sm:$0xff]
    %v235 = vld [vmem:[%s3 + $0x2c4] sm:$0xff]
    %v236 = vld [vmem:[%s3 + $0x2cc] sm:$0xff]
    %v237 = vld [vmem:[%s3 + $0x2d4] sm:$0xf]
    %v238 = vld [vmem:[%s3 + $0x2d8] sm:$0xff]
    %v239 = vld [vmem:[%s3 + $0x2e0] sm:$0xff]
    %v240 = vld [vmem:[%s3 + $0x2e8] sm:$0xff]
    %v241 = vld [vmem:[%s3 + $0x2f0] sm:$0xf]
    %v242 = vld [vmem:[%s3 + $0x2f4] sm:$0xff]
    %v243 = vld [vmem:[%s3 + $0x2fc] sm:$0xff]
    %v244 = vld [vmem:[%s3 + $0x304] sm:$0xff]
    %v245 = vld [vmem:[%s3 + $0x30c] sm:$0xf]
    %v246 = vld [vmem:[%s3 + $0x310] sm:$0xff]
    %v247 = vld [vmem:[%s3 + $0x318] sm:$0xff]
    %v248 = vld [vmem:[%s3 + $0x320] sm:$0xff]
    %v249 = vld [vmem:[%s3 + $0x328] sm:$0xf]
    %v250 = vld [vmem:[%s3 + $0x32c] sm:$0xff]
    %v251 = vld [vmem:[%s3 + $0x334] sm:$0xff]
    %v252 = vld [vmem:[%s3 + $0x33c] sm:$0xff]
    %v253 = vld [vmem:[%s3 + $0x344] sm:$0xf]
    %v254 = vld [vmem:[%s3 + $0x348] sm:$0xff]
    %v255 = vld [vmem:[%s3 + $0x350] sm:$0xff]
    %v256 = vld [vmem:[%s3 + $0x358] sm:$0xff]
    %v257 = vld [vmem:[%s3 + $0x360] sm:$0xf]
    %v258 = vld [vmem:[%s3 + $0x364] sm:$0xff]
    %v259 = vld [vmem:[%s3 + $0x36c] sm:$0xff]
    %v260 = vld [vmem:[%s3 + $0x374] sm:$0xff]
    %v261 = vld [vmem:[%s3 + $0x37c] sm:$0xf]
    %v262 = vld [vmem:[%s4] sm:$0x7f]
    %v264 = vlaneseq
    %v265 = vshrl.u32 %v264, 7
    %v266 = vsub.s32 0, %v265
    %v267 = vrot.slane %v262, %v266
    %v268 = vlaneseq
    %v269 = vshrl.u32 %v268, 7
    %v270 = vsub.s32 1, %v269
    %v271 = vrot.slane %v262, %v270
    %v272 = vlaneseq
    %v273 = vshrl.u32 %v272, 7
    %v274 = vsub.s32 2, %v273
    %v275 = vrot.slane %v262, %v274
    %v276 = vlaneseq
    %v277 = vshrl.u32 %v276, 7
    %v278 = vsub.s32 3, %v277
    %v279 = vrot.slane %v262, %v278
    %v280 = vlaneseq
    %v281 = vshrl.u32 %v280, 7
    %v282 = vsub.s32 4, %v281
    %v283 = vrot.slane %v262, %v282
    %v284 = vlaneseq
    %v285 = vshrl.u32 %v284, 7
    %v286 = vsub.s32 5, %v285
    %v287 = vrot.slane %v262, %v286
    %v288 = vlaneseq
    %v289 = vshrl.u32 %v288, 7
    %v290 = vsub.s32 6, %v289
    %v291 = vrot.slane %v262, %v290
    %v427 = vunpack.c.l.b16 %v134
    %v428 = vunpack.c.h.b16 %v134
    %v429 = vunpack.c.l.b16 %v135
    %v430 = vunpack.c.h.b16 %v135
    %v431 = vunpack.c.l.b16 %v136
    %v432 = vunpack.c.h.b16 %v136
    %v433 = vunpack.c.l.b16 %v137
    %v434 = vunpack.c.l.b16 %v138
    %v435 = vunpack.c.h.b16 %v138
    %v436 = vunpack.c.l.b16 %v139
    %v437 = vunpack.c.h.b16 %v139
    %v438 = vunpack.c.l.b16 %v140
    %v439 = vunpack.c.h.b16 %v140
    %v440 = vunpack.c.l.b16 %v141
    %v441 = vunpack.c.l.b16 %v142
    %v442 = vunpack.c.h.b16 %v142
    %v443 = vunpack.c.l.b16 %v143
    %v444 = vunpack.c.h.b16 %v143
    %v445 = vunpack.c.l.b16 %v144
    %v446 = vunpack.c.h.b16 %v144
    %v447 = vunpack.c.l.b16 %v145
    %v448 = vunpack.c.l.b16 %v146
    %v449 = vunpack.c.h.b16 %v146
    %v450 = vunpack.c.l.b16 %v147
    %v451 = vunpack.c.h.b16 %v147
    %v452 = vunpack.c.l.b16 %v148
    %v453 = vunpack.c.h.b16 %v148
    %v454 = vunpack.c.l.b16 %v149
    %v455 = vunpack.c.l.b16 %v150
    %v456 = vunpack.c.h.b16 %v150
    %v457 = vunpack.c.l.b16 %v151
    %v458 = vunpack.c.h.b16 %v151
    %v459 = vunpack.c.l.b16 %v152
    %v460 = vunpack.c.h.b16 %v152
    %v461 = vunpack.c.l.b16 %v153
    %v462 = vunpack.c.l.b16 %v154
    %v463 = vunpack.c.h.b16 %v154
    %v464 = vunpack.c.l.b16 %v155
    %v465 = vunpack.c.h.b16 %v155
    %v466 = vunpack.c.l.b16 %v156
    %v467 = vunpack.c.h.b16 %v156
    %v468 = vunpack.c.l.b16 %v157
    %v469 = vunpack.c.l.b16 %v158
    %v470 = vunpack.c.h.b16 %v158
    %v471 = vunpack.c.l.b16 %v159
    %v472 = vunpack.c.h.b16 %v159
    %v473 = vunpack.c.l.b16 %v160
    %v474 = vunpack.c.h.b16 %v160
    %v475 = vunpack.c.l.b16 %v161
    %v476 = vunpack.c.l.b16 %v162
    %v477 = vunpack.c.h.b16 %v162
    %v478 = vunpack.c.l.b16 %v163
    %v479 = vunpack.c.h.b16 %v163
    %v480 = vunpack.c.l.b16 %v164
    %v481 = vunpack.c.h.b16 %v164
    %v482 = vunpack.c.l.b16 %v165
    %v483 = vunpack.c.l.b16 %v166
    %v484 = vunpack.c.h.b16 %v166
    %v485 = vunpack.c.l.b16 %v167
    %v486 = vunpack.c.h.b16 %v167
    %v487 = vunpack.c.l.b16 %v168
    %v488 = vunpack.c.h.b16 %v168
    %v489 = vunpack.c.l.b16 %v169
    %v490 = vunpack.c.l.b16 %v170
    %v491 = vunpack.c.h.b16 %v170
    %v492 = vunpack.c.l.b16 %v171
    %v493 = vunpack.c.h.b16 %v171
    %v494 = vunpack.c.l.b16 %v172
    %v495 = vunpack.c.h.b16 %v172
    %v496 = vunpack.c.l.b16 %v173
    %v497 = vunpack.c.l.b16 %v174
    %v498 = vunpack.c.h.b16 %v174
    %v499 = vunpack.c.l.b16 %v175
    %v500 = vunpack.c.h.b16 %v175
    %v501 = vunpack.c.l.b16 %v176
    %v502 = vunpack.c.h.b16 %v176
    %v503 = vunpack.c.l.b16 %v177
    %v504 = vunpack.c.l.b16 %v178
    %v505 = vunpack.c.h.b16 %v178
    %v506 = vunpack.c.l.b16 %v179
    %v507 = vunpack.c.h.b16 %v179
    %v508 = vunpack.c.l.b16 %v180
    %v509 = vunpack.c.h.b16 %v180
    %v510 = vunpack.c.l.b16 %v181
    %v511 = vunpack.c.l.b16 %v182
    %v512 = vunpack.c.h.b16 %v182
    %v513 = vunpack.c.l.b16 %v183
    %v514 = vunpack.c.h.b16 %v183
    %v515 = vunpack.c.l.b16 %v184
    %v516 = vunpack.c.h.b16 %v184
    %v517 = vunpack.c.l.b16 %v185
    %v518 = vunpack.c.l.b16 %v186
    %v519 = vunpack.c.h.b16 %v186
    %v520 = vunpack.c.l.b16 %v187
    %v521 = vunpack.c.h.b16 %v187
    %v522 = vunpack.c.l.b16 %v188
    %v523 = vunpack.c.h.b16 %v188
    %v524 = vunpack.c.l.b16 %v189
    %v525 = vunpack.c.l.b16 %v190
    %v526 = vunpack.c.h.b16 %v190
    %v527 = vunpack.c.l.b16 %v191
    %v528 = vunpack.c.h.b16 %v191
    %v529 = vunpack.c.l.b16 %v192
    %v530 = vunpack.c.h.b16 %v192
    %v531 = vunpack.c.l.b16 %v193
    %v532 = vunpack.c.l.b16 %v194
    %v533 = vunpack.c.h.b16 %v194
    %v534 = vunpack.c.l.b16 %v195
    %v535 = vunpack.c.h.b16 %v195
    %v536 = vunpack.c.l.b16 %v196
    %v537 = vunpack.c.h.b16 %v196
    %v538 = vunpack.c.l.b16 %v197
    %v539 = vunpack.c.l.b16 %v198
    %v540 = vunpack.c.h.b16 %v198
    %v541 = vunpack.c.l.b16 %v199
    %v542 = vunpack.c.h.b16 %v199
    %v543 = vunpack.c.l.b16 %v200
    %v544 = vunpack.c.h.b16 %v200
    %v545 = vunpack.c.l.b16 %v201
    %v546 = vunpack.c.l.b16 %v202
    %v547 = vunpack.c.h.b16 %v202
    %v548 = vunpack.c.l.b16 %v203
    %v549 = vunpack.c.h.b16 %v203
    %v550 = vunpack.c.l.b16 %v204
    %v551 = vunpack.c.h.b16 %v204
    %v552 = vunpack.c.l.b16 %v205
    %v553 = vunpack.c.l.b16 %v206
    %v554 = vunpack.c.h.b16 %v206
    %v555 = vunpack.c.l.b16 %v207
    %v556 = vunpack.c.h.b16 %v207
    %v557 = vunpack.c.l.b16 %v208
    %v558 = vunpack.c.h.b16 %v208
    %v559 = vunpack.c.l.b16 %v209
    %v560 = vunpack.c.l.b16 %v210
    %v561 = vunpack.c.h.b16 %v210
    %v562 = vunpack.c.l.b16 %v211
    %v563 = vunpack.c.h.b16 %v211
    %v564 = vunpack.c.l.b16 %v212
    %v565 = vunpack.c.h.b16 %v212
    %v566 = vunpack.c.l.b16 %v213
    %v567 = vunpack.c.l.b16 %v214
    %v568 = vunpack.c.h.b16 %v214
    %v569 = vunpack.c.l.b16 %v215
    %v570 = vunpack.c.h.b16 %v215
    %v571 = vunpack.c.l.b16 %v216
    %v572 = vunpack.c.h.b16 %v216
    %v573 = vunpack.c.l.b16 %v217
    %v574 = vunpack.c.l.b16 %v218
    %v575 = vunpack.c.h.b16 %v218
    %v576 = vunpack.c.l.b16 %v219
    %v577 = vunpack.c.h.b16 %v219
    %v578 = vunpack.c.l.b16 %v220
    %v579 = vunpack.c.h.b16 %v220
    %v580 = vunpack.c.l.b16 %v221
    %v581 = vunpack.c.l.b16 %v222
    %v582 = vunpack.c.h.b16 %v222
    %v583 = vunpack.c.l.b16 %v223
    %v584 = vunpack.c.h.b16 %v223
    %v585 = vunpack.c.l.b16 %v224
    %v586 = vunpack.c.h.b16 %v224
    %v587 = vunpack.c.l.b16 %v225
    %v588 = vunpack.c.l.b16 %v226
    %v589 = vunpack.c.h.b16 %v226
    %v590 = vunpack.c.l.b16 %v227
    %v591 = vunpack.c.h.b16 %v227
    %v592 = vunpack.c.l.b16 %v228
    %v593 = vunpack.c.h.b16 %v228
    %v594 = vunpack.c.l.b16 %v229
    %v595 = vunpack.c.l.b16 %v230
    %v596 = vunpack.c.h.b16 %v230
    %v597 = vunpack.c.l.b16 %v231
    %v598 = vunpack.c.h.b16 %v231
    %v599 = vunpack.c.l.b16 %v232
    %v600 = vunpack.c.h.b16 %v232
    %v601 = vunpack.c.l.b16 %v233
    %v602 = vunpack.c.l.b16 %v234
    %v603 = vunpack.c.h.b16 %v234
    %v604 = vunpack.c.l.b16 %v235
    %v605 = vunpack.c.h.b16 %v235
    %v606 = vunpack.c.l.b16 %v236
    %v607 = vunpack.c.h.b16 %v236
    %v608 = vunpack.c.l.b16 %v237
    %v609 = vunpack.c.l.b16 %v238
    %v610 = vunpack.c.h.b16 %v238
    %v611 = vunpack.c.l.b16 %v239
    %v612 = vunpack.c.h.b16 %v239
    %v613 = vunpack.c.l.b16 %v240
    %v614 = vunpack.c.h.b16 %v240
    %v615 = vunpack.c.l.b16 %v241
    %v616 = vunpack.c.l.b16 %v242
    %v617 = vunpack.c.h.b16 %v242
    %v618 = vunpack.c.l.b16 %v243
    %v619 = vunpack.c.h.b16 %v243
    %v620 = vunpack.c.l.b16 %v244
    %v621 = vunpack.c.h.b16 %v244
    %v622 = vunpack.c.l.b16 %v245
    %v623 = vunpack.c.l.b16 %v246
    %v624 = vunpack.c.h.b16 %v246
    %v625 = vunpack.c.l.b16 %v247
    %v626 = vunpack.c.h.b16 %v247
    %v627 = vunpack.c.l.b16 %v248
    %v628 = vunpack.c.h.b16 %v248
    %v629 = vunpack.c.l.b16 %v249
    %v630 = vunpack.c.l.b16 %v250
    %v631 = vunpack.c.h.b16 %v250
    %v632 = vunpack.c.l.b16 %v251
    %v633 = vunpack.c.h.b16 %v251
    %v634 = vunpack.c.l.b16 %v252
    %v635 = vunpack.c.h.b16 %v252
    %v636 = vunpack.c.l.b16 %v253
    %v637 = vunpack.c.l.b16 %v254
    %v638 = vunpack.c.h.b16 %v254
    %v639 = vunpack.c.l.b16 %v255
    %v640 = vunpack.c.h.b16 %v255
    %v641 = vunpack.c.l.b16 %v256
    %v642 = vunpack.c.h.b16 %v256
    %v643 = vunpack.c.l.b16 %v257
    %v644 = vunpack.c.l.b16 %v258
    %v645 = vunpack.c.h.b16 %v258
    %v646 = vunpack.c.l.b16 %v259
    %v647 = vunpack.c.h.b16 %v259
    %v648 = vunpack.c.l.b16 %v260
    %v649 = vunpack.c.h.b16 %v260
    %v650 = vunpack.c.l.b16 %v261
    %v651 = vpack.c.b16 %v434, %v427
    %v652 = vpack.c.b16 %v435, %v428
    %v653 = vpack.c.b16 %v436, %v429
    %v654 = vpack.c.b16 %v437, %v430
    %v655 = vpack.c.b16 %v438, %v431
    %v656 = vpack.c.b16 %v439, %v432
    %v657 = vpack.c.b16 %v440, %v433
    %v658 = vpack.c.b16 %v448, %v441
    %v659 = vpack.c.b16 %v449, %v442
    %v660 = vpack.c.b16 %v450, %v443
    %v661 = vpack.c.b16 %v451, %v444
    %v662 = vpack.c.b16 %v452, %v445
    %v663 = vpack.c.b16 %v453, %v446
    %v664 = vpack.c.b16 %v454, %v447
    %v665 = vpack.c.b16 %v462, %v455
    %v666 = vpack.c.b16 %v463, %v456
    %v667 = vpack.c.b16 %v464, %v457
    %v668 = vpack.c.b16 %v465, %v458
    %v669 = vpack.c.b16 %v466, %v459
    %v670 = vpack.c.b16 %v467, %v460
    %v671 = vpack.c.b16 %v468, %v461
    %v672 = vpack.c.b16 %v476, %v469
    %v673 = vpack.c.b16 %v477, %v470
    %v674 = vpack.c.b16 %v478, %v471
    %v675 = vpack.c.b16 %v479, %v472
    %v676 = vpack.c.b16 %v480, %v473
    %v677 = vpack.c.b16 %v481, %v474
    %v678 = vpack.c.b16 %v482, %v475
    %v679 = vpack.c.b16 %v490, %v483
    %v680 = vpack.c.b16 %v491, %v484
    %v681 = vpack.c.b16 %v492, %v485
    %v682 = vpack.c.b16 %v493, %v486
    %v683 = vpack.c.b16 %v494, %v487
    %v684 = vpack.c.b16 %v495, %v488
    %v685 = vpack.c.b16 %v496, %v489
    %v686 = vpack.c.b16 %v504, %v497
    %v687 = vpack.c.b16 %v505, %v498
    %v688 = vpack.c.b16 %v506, %v499
    %v689 = vpack.c.b16 %v507, %v500
    %v690 = vpack.c.b16 %v508, %v501
    %v691 = vpack.c.b16 %v509, %v502
    %v692 = vpack.c.b16 %v510, %v503
    %v693 = vpack.c.b16 %v518, %v511
    %v694 = vpack.c.b16 %v519, %v512
    %v695 = vpack.c.b16 %v520, %v513
    %v696 = vpack.c.b16 %v521, %v514
    %v697 = vpack.c.b16 %v522, %v515
    %v698 = vpack.c.b16 %v523, %v516
    %v699 = vpack.c.b16 %v524, %v517
    %v700 = vpack.c.b16 %v532, %v525
    %v701 = vpack.c.b16 %v533, %v526
    %v702 = vpack.c.b16 %v534, %v527
    %v703 = vpack.c.b16 %v535, %v528
    %v704 = vpack.c.b16 %v536, %v529
    %v705 = vpack.c.b16 %v537, %v530
    %v706 = vpack.c.b16 %v538, %v531
    %v707 = vpack.c.b16 %v546, %v539
    %v708 = vpack.c.b16 %v547, %v540
    %v709 = vpack.c.b16 %v548, %v541
    %v710 = vpack.c.b16 %v549, %v542
    %v711 = vpack.c.b16 %v550, %v543
    %v712 = vpack.c.b16 %v551, %v544
    %v713 = vpack.c.b16 %v552, %v545
    %v714 = vpack.c.b16 %v560, %v553
    %v715 = vpack.c.b16 %v561, %v554
    %v716 = vpack.c.b16 %v562, %v555
    %v717 = vpack.c.b16 %v563, %v556
    %v718 = vpack.c.b16 %v564, %v557
    %v719 = vpack.c.b16 %v565, %v558
    %v720 = vpack.c.b16 %v566, %v559
    %v721 = vpack.c.b16 %v574, %v567
    %v722 = vpack.c.b16 %v575, %v568
    %v723 = vpack.c.b16 %v576, %v569
    %v724 = vpack.c.b16 %v577, %v570
    %v725 = vpack.c.b16 %v578, %v571
    %v726 = vpack.c.b16 %v579, %v572
    %v727 = vpack.c.b16 %v580, %v573
    %v728 = vpack.c.b16 %v588, %v581
    %v729 = vpack.c.b16 %v589, %v582
    %v730 = vpack.c.b16 %v590, %v583
    %v731 = vpack.c.b16 %v591, %v584
    %v732 = vpack.c.b16 %v592, %v585
    %v733 = vpack.c.b16 %v593, %v586
    %v734 = vpack.c.b16 %v594, %v587
    %v735 = vpack.c.b16 %v602, %v595
    %v736 = vpack.c.b16 %v603, %v596
    %v737 = vpack.c.b16 %v604, %v597
    %v738 = vpack.c.b16 %v605, %v598
    %v739 = vpack.c.b16 %v606, %v599
    %v740 = vpack.c.b16 %v607, %v600
    %v741 = vpack.c.b16 %v608, %v601
    %v742 = vpack.c.b16 %v616, %v609
    %v743 = vpack.c.b16 %v617, %v610
    %v744 = vpack.c.b16 %v618, %v611
    %v745 = vpack.c.b16 %v619, %v612
    %v746 = vpack.c.b16 %v620, %v613
    %v747 = vpack.c.b16 %v621, %v614
    %v748 = vpack.c.b16 %v622, %v615
    %v749 = vpack.c.b16 %v630, %v623
    %v750 = vpack.c.b16 %v631, %v624
    %v751 = vpack.c.b16 %v632, %v625
    %v752 = vpack.c.b16 %v633, %v626
    %v753 = vpack.c.b16 %v634, %v627
    %v754 = vpack.c.b16 %v635, %v628
    %v755 = vpack.c.b16 %v636, %v629
    %v756 = vpack.c.b16 %v644, %v637
    %v757 = vpack.c.b16 %v645, %v638
    %v758 = vpack.c.b16 %v646, %v639
    %v759 = vpack.c.b16 %v647, %v640
    %v760 = vpack.c.b16 %v648, %v641
    %v761 = vpack.c.b16 %v649, %v642
    %v762 = vpack.c.b16 %v650, %v643
    %875 = vmatprep.subr.bf16.mxu0 %v652
    %876 = vmatpush1.bf16.msra.mxu0 %v651
    %877 = vmatprep.subr.bf16.mxu0 %v659
    %878 = vmatpush1.bf16.msra.mxu0 %v658
    %879 = vmatprep.subr.bf16.mxu0 %v666
    %880 = vmatpush1.bf16.msra.mxu0 %v665
    %881 = vmatprep.subr.bf16.mxu0 %v673
    %882 = vmatpush1.bf16.msra.mxu0 %v672
    %883 = vmatprep.subr.bf16.mxu0 %v680
    %884 = vmatpush1.bf16.msra.mxu0 %v679
    %885 = vmatprep.subr.bf16.mxu0 %v687
    %886 = vmatpush1.bf16.msra.mxu0 %v686
    %887 = vmatprep.subr.bf16.mxu0 %v694
    %888 = vmatpush1.bf16.msra.mxu0 %v693
    %889 = vmatprep.subr.bf16.mxu0 %v701
    %890 = vmatpush1.bf16.msra.mxu0 %v700
    %891 = vmatprep.subr.bf16.mxu0 %v708
    %892 = vmatpush1.bf16.msra.mxu0 %v707
    %893 = vmatprep.subr.bf16.mxu0 %v715
    %894 = vmatpush1.bf16.msra.mxu0 %v714
    %895 = vmatprep.subr.bf16.mxu0 %v722
    %896 = vmatpush1.bf16.msra.mxu0 %v721
    %897 = vmatprep.subr.bf16.mxu0 %v729
    %898 = vmatpush1.bf16.msra.mxu0 %v728
    %899 = vmatprep.subr.bf16.mxu0 %v736
    %900 = vmatpush1.bf16.msra.mxu0 %v735
    %901 = vmatprep.subr.bf16.mxu0 %v743
    %902 = vmatpush1.bf16.msra.mxu0 %v742
    %903 = vmatprep.subr.bf16.mxu0 %v750
    %904 = vmatpush1.bf16.msra.mxu0 %v749
    %905 = vmatprep.subr.bf16.mxu0 %v757
    %906 = vmatpush1.bf16.msra.mxu0 %v756
    %907 = vmatprep.mubr.bf16.mxu0 %v133
    %908 = vmatmul.mubr.bf16.gmra.mrb[0].mxu0 %v132
    %v909 = vpop.f32.mrb[0].mxu0
    %v910 = vadd.f32 %v267, %v909
    %v911 = vpop.f32.mrb[0].mxu0
    %v912 = vadd.f32 %v271, %v911
    %v913 = vpop.f32.mrb[0].mxu0
    %v914 = vpop.f32.mrb[0].mxu0
    %915 = vdwg.mxu0
    %916 = vmatprep.subr.bf16.mxu0 %v654
    %917 = vmatpush1.bf16.msra.mxu0 %v653
    %918 = vmatprep.subr.bf16.mxu0 %v661
    %919 = vmatpush1.bf16.msra.mxu0 %v660
    %920 = vmatprep.subr.bf16.mxu0 %v668
    %921 = vmatpush1.bf16.msra.mxu0 %v667
    %922 = vmatprep.subr.bf16.mxu0 %v675
    %923 = vmatpush1.bf16.msra.mxu0 %v674
    %924 = vmatprep.subr.bf16.mxu0 %v682
    %925 = vmatpush1.bf16.msra.mxu0 %v681
    %926 = vmatprep.subr.bf16.mxu0 %v689
    %927 = vmatpush1.bf16.msra.mxu0 %v688
    %928 = vmatprep.subr.bf16.mxu0 %v696
    %929 = vmatpush1.bf16.msra.mxu0 %v695
    %930 = vmatprep.subr.bf16.mxu0 %v703
    %931 = vmatpush1.bf16.msra.mxu0 %v702
    %932 = vmatprep.subr.bf16.mxu0 %v710
    %933 = vmatpush1.bf16.msra.mxu0 %v709
    %934 = vmatprep.subr.bf16.mxu0 %v717
    %935 = vmatpush1.bf16.msra.mxu0 %v716
    %936 = vmatprep.subr.bf16.mxu0 %v724
    %937 = vmatpush1.bf16.msra.mxu0 %v723
    %938 = vmatprep.subr.bf16.mxu0 %v731
    %939 = vmatpush1.bf16.msra.mxu0 %v730
    %940 = vmatprep.subr.bf16.mxu0 %v738
    %941 = vmatpush1.bf16.msra.mxu0 %v737
    %942 = vmatprep.subr.bf16.mxu0 %v745
    %943 = vmatpush1.bf16.msra.mxu0 %v744
    %944 = vmatprep.subr.bf16.mxu0 %v752
    %945 = vmatpush1.bf16.msra.mxu0 %v751
    %946 = vmatprep.subr.bf16.mxu0 %v759
    %947 = vmatpush1.bf16.msra.mxu0 %v758
    %948 = vmatprep.mubr.bf16.mxu0 %v133
    %949 = vmatmul.mubr.bf16.gmra.mrb[0].mxu0 %v132
    %v950 = vpop.f32.mrb[0].mxu0
    %v951 = vadd.f32 %v275, %v950
    %v952 = vpop.f32.mrb[0].mxu0
    %v953 = vadd.f32 %v279, %v952
    %v954 = vpop.f32.mrb[0].mxu0
    %v955 = vpop.f32.mrb[0].mxu0
    %956 = vdwg.mxu0
    %957 = vmatprep.subr.bf16.mxu0 %v656
    %958 = vmatpush1.bf16.msra.mxu0 %v655
    %959 = vmatprep.subr.bf16.mxu0 %v663
    %960 = vmatpush1.bf16.msra.mxu0 %v662
    %961 = vmatprep.subr.bf16.mxu0 %v670
    %962 = vmatpush1.bf16.msra.mxu0 %v669
    %963 = vmatprep.subr.bf16.mxu0 %v677
    %964 = vmatpush1.bf16.msra.mxu0 %v676
    %965 = vmatprep.subr.bf16.mxu0 %v684
    %966 = vmatpush1.bf16.msra.mxu0 %v683
    %967 = vmatprep.subr.bf16.mxu0 %v691
    %968 = vmatpush1.bf16.msra.mxu0 %v690
    %969 = vmatprep.subr.bf16.mxu0 %v698
    %970 = vmatpush1.bf16.msra.mxu0 %v697
    %971 = vmatprep.subr.bf16.mxu0 %v705
    %972 = vmatpush1.bf16.msra.mxu0 %v704
    %973 = vmatprep.subr.bf16.mxu0 %v712
    %974 = vmatpush1.bf16.msra.mxu0 %v711
    %975 = vmatprep.subr.bf16.mxu0 %v719
    %976 = vmatpush1.bf16.msra.mxu0 %v718
    %977 = vmatprep.subr.bf16.mxu0 %v726
    %978 = vmatpush1.bf16.msra.mxu0 %v725
    %979 = vmatprep.subr.bf16.mxu0 %v733
    %980 = vmatpush1.bf16.msra.mxu0 %v732
    %981 = vmatprep.subr.bf16.mxu0 %v740
    %982 = vmatpush1.bf16.msra.mxu0 %v739
    %983 = vmatprep.subr.bf16.mxu0 %v747
    %984 = vmatpush1.bf16.msra.mxu0 %v746
    %985 = vmatprep.subr.bf16.mxu0 %v754
    %986 = vmatpush1.bf16.msra.mxu0 %v753
    %987 = vmatprep.subr.bf16.mxu0 %v761
    %988 = vmatpush1.bf16.msra.mxu0 %v760
    %989 = vmatprep.mubr.bf16.mxu0 %v133
    %990 = vmatmul.mubr.bf16.gmra.mrb[0].mxu0 %v132
    %v991 = vpop.f32.mrb[0].mxu0
    %v992 = vadd.f32 %v283, %v991
    %v993 = vpop.f32.mrb[0].mxu0
    %v994 = vadd.f32 %v287, %v993
    %v995 = vpop.f32.mrb[0].mxu0
    %v996 = vpop.f32.mrb[0].mxu0
    %997 = vdwg.mxu0
    %998 = vmatprep.subr.bf16.mxu0 0
    %999 = vmatpush1.bf16.msra.mxu0 %v657
    %1000 = vmatprep.subr.bf16.mxu0 0
    %1001 = vmatpush1.bf16.msra.mxu0 %v664
    %1002 = vmatprep.subr.bf16.mxu0 0
    %1003 = vmatpush1.bf16.msra.mxu0 %v671
    %1004 = vmatprep.subr.bf16.mxu0 0
    %1005 = vmatpush1.bf16.msra.mxu0 %v678
    %1006 = vmatprep.subr.bf16.mxu0 0
    %1007 = vmatpush1.bf16.msra.mxu0 %v685
    %1008 = vmatprep.subr.bf16.mxu0 0
    %1009 = vmatpush1.bf16.msra.mxu0 %v692
    %1010 = vmatprep.subr.bf16.mxu0 0
    %1011 = vmatpush1.bf16.msra.mxu0 %v699
    %1012 = vmatprep.subr.bf16.mxu0 0
    %1013 = vmatpush1.bf16.msra.mxu0 %v706
    %1014 = vmatprep.subr.bf16.mxu0 0
    %1015 = vmatpush1.bf16.msra.mxu0 %v713
    %1016 = vmatprep.subr.bf16.mxu0 0
    %1017 = vmatpush1.bf16.msra.mxu0 %v720
    %1018 = vmatprep.subr.bf16.mxu0 0
    %1019 = vmatpush1.bf16.msra.mxu0 %v727
    %1020 = vmatprep.subr.bf16.mxu0 0
    %1021 = vmatpush1.bf16.msra.mxu0 %v734
    %1022 = vmatprep.subr.bf16.mxu0 0
    %1023 = vmatpush1.bf16.msra.mxu0 %v741
    %1024 = vmatprep.subr.bf16.mxu0 0
    %1025 = vmatpush1.bf16.msra.mxu0 %v748
    %1026 = vmatprep.subr.bf16.mxu0 0
    %1027 = vmatpush1.bf16.msra.mxu0 %v755
    %1028 = vmatprep.subr.bf16.mxu0 0
    %1029 = vmatpush1.bf16.msra.mxu0 %v762
    %1030 = vmatprep.mubr.bf16.mxu0 %v133
    %1031 = vmatmul.mubr.bf16.gmra.mrb[0].mxu0 %v132
    %v1032 = vpop.f32.mrb[0].mxu0
    %v1033 = vadd.f32 %v291, %v1032
    %v1034 = vpop.f32.mrb[0].mxu0
    %v1035 = vpop.f32.mrb[0].mxu0
    %v1036 = vpop.f32.mrb[0].mxu0
    %1037 = vdwg.mxu0
    %v1038 = vtanh.pop %v910
    %v1039 = vtanh.pop %v912
    %v1040 = vtanh.pop %v951
    %v1041 = vtanh.pop %v953
    %v1042 = vtanh.pop %v992
    %v1043 = vtanh.pop %v994
    %v1044 = vtanh.pop %v1033
    %1045 = vst [vmem:[#allocation2] sm:$0xff] %v1038
    %1046 = vst [vmem:[#allocation2 + $0x8] sm:$0xff] %v1039
    %1047 = vst [vmem:[#allocation2 + $0x10] sm:$0xff] %v1040
    %1048 = vst [vmem:[#allocation2 + $0x18] sm:$0xff] %v1041
    %1049 = vst [vmem:[#allocation2 + $0x20] sm:$0xff] %v1042
    %1050 = vst [vmem:[#allocation2 + $0x28] sm:$0xff] %v1043
    %vm1051 = vcmask 130048
    %1052 = vst.msk [vmem:[#allocation2 + $0x30] sm:$0xff] %vm1051, %v1044
    // Predicated region
    $region22: #{generator_forward.1} parent=1 // pred_check
      _
    $region23: #{generator_forward.1} parent=1 // pred_check_branch
      %1054 = sbr.rel (0) target = $region25
    $region24: #{generator_forward.1} parent=1 // pred_region
      %s1056 = ssub.s32 896, 896
      %1057 = vsyncadd [#allocation3], %s1056
      %s1059 = sshll.u32 [#allocation2], 4
      %s1060 = int_to_ptr.vmem [resolvable:$true] %s1059
      %1062 = dma.vmem_to_hbm [thread:$0]  %s1060, 896, %s5, [#allocation3]
    $region25: #{generator_forward.1} parent=1 // pred_fallthru
      _
    // Predicated region
    $region26: #{generator_forward.1} parent=1 // pred_check
      _
    $region27: #{generator_forward.1} parent=1 // pred_check_branch
      %1064 = sbr.rel (0) target = $region29
    $region28: #{generator_forward.1} parent=1 // pred_region
      %1065 = dma.done [#allocation3], 896
    $region29: #{generator_forward.1} parent=1 // pred_fallthru
      _
    %1066 = vsyncpa [#allocation3], 1

</llo_original>
